<compile_context>
chip_gen: v7x
topology: tpu7x:2x2x1
jax: 0.10.0
libtpu: 0.0.40
codegen_flags: <defaults>
</compile_context>

<pallas_src>
import functools

import jax
import jax.numpy as jnp
from jax import lax
from jax.experimental import pallas as pl
from jax.experimental.pallas import tpu as pltpu


def _round_up(x, m):
    return (x + m - 1) // m * m


def rnncell_seq_kernel(
    x_ref,      # (Tc, Bt, Ip)  bf16 input chunk
    h0_ref,     # (Bt, Hp)      f32  initial hidden (batch tile)
    wihT_ref,   # (Ip, Hp)      bf16 i2h weight, pre-transposed + zero-padded
    whhT_ref,   # (Hp, Hp)      bf16 h2h weight, pre-transposed + zero-padded
    whoT_ref,   # (Hp, Hp)      bf16 h2o weight, pre-transposed + zero-padded
    bpre_ref,   # (1, Hp)       f32  b_ih + b_hh (fused)
    bho_ref,    # (1, Hp)       f32  b_ho
    y_ref,      # (Tc, Bt, Hp)  outputs for this chunk (bf16 by default)
    h_ref,      # (Bt, Hp)      f32  hidden state (resident across time chunks)
    pre_sc,     # VMEM (Tc, Bt, Hp) f32 scratch: pre-activations of this chunk
    *,
    t_valid,    # true (unpadded) number of timesteps
):
    c = pl.program_id(1)                      # time-chunk index (serial axis)
    tc, bt, ip = x_ref.shape
    hp = h_ref.shape[-1]

    @pl.when(c == 0)
    def _():
        h_ref[...] = h0_ref[...]

    # Chunk-level input projection: ONE bf16 MXU matmul for all Tc timesteps
    # (f32 accumulation) with the fused i2h+h2h bias, hoisted out of the
    # serial recurrence.
    xproj = (
        jnp.dot(x_ref[...].reshape(tc * bt, ip), wihT_ref[...],
                preferred_element_type=jnp.float32)
        + bpre_ref[...]
    )
    pre_sc[...] = xproj.reshape(tc, bt, hp)

    # Serial recurrence: only the (Bt,Hp)x(Hp,Hp) matmul is on the critical path.
    # fori_loop with a bounded unroll keeps scheduler visibility while capping
    # vreg pressure at large Tc / Hp.
    # TODO(synk): hold whhT resident in the MXU across the chunk via
    #   pltpu.matmul_push_rhs / matmul_acc_lhs / matmul_pop (valid while Hp fits
    #   one staging tile) so each step pushes only Bt LHS rows instead of the
    #   full Hp-row weight.
    # TODO(synk): on v6e/v7x, push whoT into the second MXU and interleave the
    #   per-step h2o matmul inside this loop to hide the output head for free.
    whh = whhT_ref[...]
    base = c * tc
    needs_mask = (t_valid % tc) != 0          # static: True only if T was padded

    def step(t, h):
        pre = pre_sc[t] + jnp.dot(h.astype(whh.dtype), whh,
                                  preferred_element_type=jnp.float32)
        pre_sc[t] = pre                       # RNNCell's pre-activation
        h_new = jnp.tanh(pre)
        if needs_mask:                        # freeze hidden on padded timesteps
            h_new = jnp.where(base + t < t_valid, h_new, h)
        return h_new

    if tc <= 16:
        unroll = True
    elif tc % 8 == 0:
        unroll = 8
    elif tc % 4 == 0:
        unroll = 4
    else:
        unroll = True
    h_ref[...] = lax.fori_loop(0, tc, step, h_ref[...], unroll=unroll)

    # Output head, batched over the whole chunk:  y = tanh(h2o(pre-activation)).
    y = jnp.tanh(
        jnp.dot(pre_sc[...].astype(whoT_ref.dtype).reshape(tc * bt, hp),
                whoT_ref[...], preferred_element_type=jnp.float32)
        + bho_ref[...]
    )
    y_ref[...] = y.reshape(tc, bt, hp).astype(y_ref.dtype)


def rnncell_forward(x_seq, params, hidden=None, *, max_chunk=32, batch_tile=None,
                    out_dtype=jnp.bfloat16):
    """Run the RNNCell over a sequence.

    x_seq:  [T, B, I] float32.  hidden: [B, H] or None (-> zeros, as in the module).
    Returns (y [T, B, H] (out_dtype), new_hidden [B, H] f32); each step ==
    RNNCell.forward exactly (up to bf16 weight/activation quantization).
    """
    x_seq = jnp.asarray(x_seq, jnp.float32)
    T, B, I = x_seq.shape
    H = params["w_hh"].shape[0]
    f32, bf16 = jnp.float32, jnp.bfloat16

    # TPU-native tiles: sublanes multiple of 8, lanes multiple of 128.
    bp = _round_up(max(B, 8), 8)
    ip = _round_up(I, 128)
    hp = _round_up(H, 128)

    # Time chunking: tc*Bp >= 256 rows feeds the 256-wide MXU (v6e/v7x).  T is
    # padded to a multiple of tc (padded steps masked in-kernel) rather than
    # collapsing tc for awkward / prime T.
    tc = min(T, max_chunk)
    tp = _round_up(T, tc)

    # Optional batch tiling: leading "parallel" grid axis (v7x: set
    # batch_tile = bp // 2 to shard across the two TensorCores).
    if batch_tile is None:
        bt = bp
    else:
        bt = max(8, _round_up(min(batch_tile, bp), 8))
        while bp % bt:
            bt += 8

    # bf16 weights / input stream (f32 accumulation in-kernel): native MXU bf16
    # path, half the dominant HBM read stream and half the weight VMEM.
    xp = jnp.zeros((tp, bp, ip), bf16).at[:T, :B, :I].set(x_seq.astype(bf16))
    h0 = jnp.zeros((bp, hp), f32)
    if hidden is not None:
        h0 = h0.at[:B, :H].set(jnp.asarray(hidden, f32))

    # Pre-transpose (+ zero-pad) weights ONCE; fuse the two input-side biases.
    wihT = jnp.zeros((ip, hp), bf16).at[:I, :H].set(params["w_ih"].T.astype(bf16))
    whhT = jnp.zeros((hp, hp), bf16).at[:H, :H].set(params["w_hh"].T.astype(bf16))
    whoT = jnp.zeros((hp, hp), bf16).at[:H, :H].set(params["w_ho"].T.astype(bf16))
    bpre = jnp.zeros((1, hp), f32).at[0, :H].set(
        (params["b_ih"] + params["b_hh"]).astype(f32))
    bho = jnp.zeros((1, hp), f32).at[0, :H].set(params["b_ho"].astype(f32))

    grid = (bp // bt, tp // tc)

    in_specs = [
        pl.BlockSpec((tc, bt, ip), lambda bi, c: (c, bi, 0)),
        pl.BlockSpec((bt, hp), lambda bi, c: (bi, 0)),
        # TODO(synk): for very large H on v7x (64 MiB VMEM), mark the three
        # weight specs + biases pipeline_mode=pl.Buffered(1) (constant index
        # maps -> single-buffered) to halve their VMEM footprint.
        pl.BlockSpec((ip, hp), lambda bi, c: (0, 0)),
        pl.BlockSpec((hp, hp), lambda bi, c: (0, 0)),
        pl.BlockSpec((hp, hp), lambda bi, c: (0, 0)),
        pl.BlockSpec((1, hp), lambda bi, c: (0, 0)),
        pl.BlockSpec((1, hp), lambda bi, c: (0, 0)),
    ]
    out_shape = (
        jax.ShapeDtypeStruct((tp, bp, hp), out_dtype),   # y: bf16 -> half writeback
        jax.ShapeDtypeStruct((bp, hp), f32),             # final hidden
    )
    out_specs = (
        pl.BlockSpec((tc, bt, hp), lambda bi, c: (c, bi, 0)),
        pl.BlockSpec((bt, hp), lambda bi, c: (bi, 0)),   # resident across chunks
    )

    # Explicit VMEM budget sized from the actual buffers (assume everything
    # double-buffered) with generous headroom.
    y_isz = jnp.dtype(out_dtype).itemsize
    buf_bytes = (
        2 * (ip * hp + 2 * hp * hp)      # bf16 weights
        + 4 * 2 * hp                     # f32 biases
        + 2 * tc * bt * ip               # bf16 x block
        + y_isz * tc * bt * hp           # y block
        + 4 * 2 * bt * hp                # h0 + resident hidden
    )
    scratch_bytes = 4 * tc * bt * hp
    vmem_limit = int(min(4 * buf_bytes + 2 * scratch_bytes + (8 << 20), 100 << 20))

    cost = pl.CostEstimate(
        flops=int(2 * tp * bp * hp * (ip + 2 * hp)),
        transcendentals=int(2 * tp * bp * hp),
        bytes_accessed=int(2 * tp * bp * ip + y_isz * tp * bp * hp
                           + 2 * (ip * hp + 2 * hp * hp)
                           + 4 * (2 * bp * hp + 2 * hp)),
    )

    y_pad, h_pad = pl.pallas_call(
        functools.partial(rnncell_seq_kernel, t_valid=T),
        out_shape=out_shape,
        grid_spec=pltpu.PrefetchScalarGridSpec(
            num_scalar_prefetch=0,
            grid=grid,
            in_specs=in_specs,
            out_specs=out_specs,
            scratch_shapes=[pltpu.VMEM((tc, bt, hp), f32)],
        ),
        compiler_params=pltpu.CompilerParams(
            # Batch tiles are independent (shardable across v7x's 2 TensorCores);
            # the time-chunk recurrence is strictly sequential.
            dimension_semantics=("parallel", "arbitrary"),
            vmem_limit_bytes=vmem_limit,
        ),
        cost_estimate=cost,
    )(xp, h0, wihT, whhT, whoT, bpre, bho)

    return y_pad[:T, :B, :H], h_pad[:B, :H]


def init_params(key, input_size, hidden_size):
    """PyTorch nn.Linear default init: U(-1/sqrt(fan_in), 1/sqrt(fan_in))."""
    ks = jax.random.split(key, 6)

    def lin(kw, kb, out_f, in_f):
        bound = 1.0 / (in_f ** 0.5)
        w = jax.random.uniform(kw, (out_f, in_f), jnp.float32, -bound, bound)
        b = jax.random.uniform(kb, (out_f,), jnp.float32, -bound, bound)
        return w, b

    p = {}
    p["w_ih"], p["b_ih"] = lin(ks[0], ks[1], hidden_size, input_size)
    p["w_hh"], p["b_hh"] = lin(ks[2], ks[3], hidden_size, hidden_size)
    p["w_ho"], p["b_ho"] = lin(ks[4], ks[5], hidden_size, hidden_size)
    return p


def rnncell_step_reference(x, h, p):
    """Exact f32 mirror of RNNCell.forward: y = tanh(h2o(pre)), h_new = tanh(pre)."""
    pre = x @ p["w_ih"].T + p["b_ih"] + h @ p["w_hh"].T + p["b_hh"]
    y = pre @ p["w_ho"].T + p["b_ho"]
    return jnp.tanh(y), jnp.tanh(pre)


def rnncell_seq_reference(x_seq, p, hidden=None):
    T, B, _ = x_seq.shape
    H = p["w_hh"].shape[0]
    h = jnp.zeros((B, H), jnp.float32) if hidden is None else hidden
    ys = []
    for t in range(T):
        y, h = rnncell_step_reference(x_seq[t], h, p)
        ys.append(y)
    return jnp.stack(ys), h


if __name__ == "__main__":
    T, B, I, H = 8, 2, 16, 32
    key = jax.random.PRNGKey(0)
    kx, kp, kh = jax.random.split(key, 3)
    x = jax.random.normal(kx, (T, B, I), jnp.float32)
    params = init_params(kp, I, H)

    # Sequence of RNNCell steps, hidden=None -> zeros (module default).
    y, h = rnncell_forward(x, params)
    y = jax.block_until_ready(y)
    h = jax.block_until_ready(h)
    ref_y, ref_h = rnncell_seq_reference(x, params)
    # bf16 weights / activations inside the kernel -> loosened tolerances.
    assert jnp.allclose(y.astype(jnp.float32), ref_y, atol=5e-2, rtol=5e-2)
    assert jnp.allclose(h, ref_h, atol=5e-2, rtol=5e-2)

    # Single step with an explicit hidden == the module forward exactly.
    h_init = jax.random.normal(kh, (B, H), jnp.float32)
    y1, h1 = rnncell_forward(x[:1], params, hidden=h_init)
    y1 = jax.block_until_ready(y1)
    h1 = jax.block_until_ready(h1)
    ry, rh = rnncell_step_reference(x[0], h_init, params)
    assert jnp.allclose(y1[0].astype(jnp.float32), ry, atol=5e-2, rtol=5e-2)
    assert jnp.allclose(h1, rh, atol=5e-2, rtol=5e-2)

    print("KERNEL_OK")
</pallas_src>

<mosaic_0001>
module attributes {stable_mosaic.version = 11 : i64} {
  func.func @rnncell_seq_kernel(%arg0: i32, %arg1: i32, %arg2: memref<8x8x128xbf16, #tpu.memory_space<vmem>>, %arg3: memref<8x128xf32, #tpu.memory_space<vmem>>, %arg4: memref<128x128xbf16, #tpu.memory_space<vmem>>, %arg5: memref<128x128xbf16, #tpu.memory_space<vmem>>, %arg6: memref<128x128xbf16, #tpu.memory_space<vmem>>, %arg7: memref<1x128xf32, #tpu.memory_space<vmem>>, %arg8: memref<1x128xf32, #tpu.memory_space<vmem>>, %arg9: memref<8x8x128xbf16, #tpu.memory_space<vmem>>, %arg10: memref<8x128xf32, #tpu.memory_space<vmem>>, %arg11: memref<8x8x128xf32, #tpu.memory_space<vmem>>) attributes {dimension_semantics = [#tpu.dimension_semantics<parallel>, #tpu.dimension_semantics<arbitrary>], iteration_bounds = array<i64: 1, 1>, scalar_prefetch = 0 : i64, scratch_operands = 1 : i64, tpu.core_type = #tpu.core_type<tc>, window_params = [{transform_indices = @transform_0, window_bounds = array<i64: 8, 8, 128>}, {transform_indices = @transform_1, window_bounds = array<i64: 8, 128>}, {pipeline_mode = #tpu.pipeline_mode<synchronous>, transform_indices = @transform_2, window_bounds = array<i64: 128, 128>}, {pipeline_mode = #tpu.pipeline_mode<synchronous>, transform_indices = @transform_3, window_bounds = array<i64: 128, 128>}, {pipeline_mode = #tpu.pipeline_mode<synchronous>, transform_indices = @transform_4, window_bounds = array<i64: 128, 128>}, {pipeline_mode = #tpu.pipeline_mode<synchronous>, transform_indices = @transform_5, window_bounds = array<i64: 1, 128>}, {pipeline_mode = #tpu.pipeline_mode<synchronous>, transform_indices = @transform_6, window_bounds = array<i64: 1, 128>}, {transform_indices = @transform_7, window_bounds = array<i64: 8, 8, 128>}, {transform_indices = @transform_8, window_bounds = array<i64: 8, 128>}]} {
    %c0_i32 = arith.constant 0 : i32
    %0 = arith.cmpi eq, %arg1, %c0_i32 : i32
    %1 = arith.extui %0 : i1 to i32
    %c0_i32_0 = arith.constant 0 : i32
    %2 = arith.cmpi ne, %1, %c0_i32_0 : i32
    scf.if %2 {
      %c0_68 = arith.constant 0 : index
      %c0_69 = arith.constant 0 : index
      %115 = vector.load %arg3[%c0_68, %c0_69] : memref<8x128xf32, #tpu.memory_space<vmem>>, vector<8x128xf32>
      %c0_70 = arith.constant 0 : index
      %c0_71 = arith.constant 0 : index
      %116 = vector.load %arg10[%c0_70, %c0_71] : memref<8x128xf32, #tpu.memory_space<vmem>>, vector<8x128xf32>
      tpu.vector_store %arg10[%c0_70, %c0_71], %115 {strides = array<i32>} : memref<8x128xf32, #tpu.memory_space<vmem>>, vector<8x128xf32>,
    } else {
    }
    %c0 = arith.constant 0 : index
    %c0_1 = arith.constant 0 : index
    %c0_2 = arith.constant 0 : index
    %3 = vector.load %arg2[%c0, %c0_1, %c0_2] : memref<8x8x128xbf16, #tpu.memory_space<vmem>>, vector<8x8x128xbf16>
    %4 = vector.shape_cast %3 : vector<8x8x128xbf16> to vector<64x128xbf16>
    %c0_3 = arith.constant 0 : index
    %c0_4 = arith.constant 0 : index
    %5 = vector.load %arg4[%c0_3, %c0_4] : memref<128x128xbf16, #tpu.memory_space<vmem>>, vector<128x128xbf16>
    %cst = arith.constant dense<0.000000e+00> : vector<64x128xf32>
    %6 = tpu.matmul %4, %5, %cst {dimension_numbers = #tpu.dot_dimension_numbers<[1], [0], [0], [1], [0, 0, 1, 1], [], []>} : vector<64x128xbf16>, vector<128x128xbf16>, vector<64x128xf32> -> vector<64x128xf32>
    %c0_5 = arith.constant 0 : index
    %c0_6 = arith.constant 0 : index
    %7 = vector.load %arg7[%c0_5, %c0_6] : memref<1x128xf32, #tpu.memory_space<vmem>>, vector<1x128xf32>
    %8 = vector.broadcast %7 : vector<1x128xf32> to vector<64x128xf32>
    %9 = arith.addf %6, %8 : vector<64x128xf32>
    %10 = vector.shape_cast %9 : vector<64x128xf32> to vector<8x8x128xf32>
    %c0_7 = arith.constant 0 : index
    %c0_8 = arith.constant 0 : index
    %c0_9 = arith.constant 0 : index
    %11 = vector.load %arg11[%c0_7, %c0_8, %c0_9] : memref<8x8x128xf32, #tpu.memory_space<vmem>>, vector<8x8x128xf32>
    tpu.vector_store %arg11[%c0_7, %c0_8, %c0_9], %10 {strides = array<i32>} : memref<8x8x128xf32, #tpu.memory_space<vmem>>, vector<8x8x128xf32>,
    %c0_10 = arith.constant 0 : index
    %c0_11 = arith.constant 0 : index
    %12 = vector.load %arg5[%c0_10, %c0_11] : memref<128x128xbf16, #tpu.memory_space<vmem>>, vector<128x128xbf16>
    %c0_12 = arith.constant 0 : index
    %c0_13 = arith.constant 0 : index
    %13 = vector.load %arg10[%c0_12, %c0_13] : memref<8x128xf32, #tpu.memory_space<vmem>>, vector<8x128xf32>
    %c0_i32_14 = arith.constant 0 : i32
    %14 = arith.index_cast %c0_i32_14 : i32 to index
    %c0_15 = arith.constant 0 : index
    %c0_16 = arith.constant 0 : index
    %15 = vector.load %arg11[%14, %c0_15, %c0_16] : memref<8x8x128xf32, #tpu.memory_space<vmem>>, vector<1x8x128xf32>
    %16 = vector.shape_cast %15 : vector<1x8x128xf32> to vector<8x128xf32>
    %17 = arith.truncf %13 : vector<8x128xf32> to vector<8x128xbf16>
    %cst_17 = arith.constant dense<0.000000e+00> : vector<8x128xf32>
    %18 = tpu.matmul %17, %12, %cst_17 {dimension_numbers = #tpu.dot_dimension_numbers<[1], [0], [0], [1], [0, 0, 1, 1], [], []>} : vector<8x128xbf16>, vector<128x128xbf16>, vector<8x128xf32> -> vector<8x128xf32>
    %19 = arith.addf %16, %18 : vector<8x128xf32>
    %20 = arith.index_cast %c0_i32_14 : i32 to index
    %c0_18 = arith.constant 0 : index
    %c0_19 = arith.constant 0 : index
    %21 = vector.load %arg11[%20, %c0_18, %c0_19] : memref<8x8x128xf32, #tpu.memory_space<vmem>>, vector<1x8x128xf32>
    %22 = vector.shape_cast %21 : vector<1x8x128xf32> to vector<8x128xf32>
    %23 = vector.shape_cast %19 : vector<8x128xf32> to vector<1x8x128xf32>
    tpu.vector_store %arg11[%20, %c0_18, %c0_19], %23 {strides = array<i32>} : memref<8x8x128xf32, #tpu.memory_space<vmem>>, vector<1x8x128xf32>,
    %24 = math.tanh %19 : vector<8x128xf32>
    %c1_i32 = arith.constant 1 : i32
    %25 = arith.index_cast %c1_i32 : i32 to index
    %c0_20 = arith.constant 0 : index
    %c0_21 = arith.constant 0 : index
    %26 = vector.load %arg11[%25, %c0_20, %c0_21] : memref<8x8x128xf32, #tpu.memory_space<vmem>>, vector<1x8x128xf32>
    %27 = vector.shape_cast %26 : vector<1x8x128xf32> to vector<8x128xf32>
    %28 = arith.truncf %24 : vector<8x128xf32> to vector<8x128xbf16>
    %cst_22 = arith.constant dense<0.000000e+00> : vector<8x128xf32>
    %29 = tpu.matmul %28, %12, %cst_22 {dimension_numbers = #tpu.dot_dimension_numbers<[1], [0], [0], [1], [0, 0, 1, 1], [], []>} : vector<8x128xbf16>, vector<128x128xbf16>, vector<8x128xf32> -> vector<8x128xf32>
    %30 = arith.addf %27, %29 : vector<8x128xf32>
    %31 = arith.index_cast %c1_i32 : i32 to index
    %c0_23 = arith.constant 0 : index
    %c0_24 = arith.constant 0 : index
    %32 = vector.load %arg11[%31, %c0_23, %c0_24] : memref<8x8x128xf32, #tpu.memory_space<vmem>>, vector<1x8x128xf32>
    %33 = vector.shape_cast %32 : vector<1x8x128xf32> to vector<8x128xf32>
    %34 = vector.shape_cast %30 : vector<8x128xf32> to vector<1x8x128xf32>
    tpu.vector_store %arg11[%31, %c0_23, %c0_24], %34 {strides = array<i32>} : memref<8x8x128xf32, #tpu.memory_space<vmem>>, vector<1x8x128xf32>,
    %35 = math.tanh %30 : vector<8x128xf32>
    %c2_i32 = arith.constant 2 : i32
    %36 = arith.index_cast %c2_i32 : i32 to index
    %c0_25 = arith.constant 0 : index
    %c0_26 = arith.constant 0 : index
    %37 = vector.load %arg11[%36, %c0_25, %c0_26] : memref<8x8x128xf32, #tpu.memory_space<vmem>>, vector<1x8x128xf32>
    %38 = vector.shape_cast %37 : vector<1x8x128xf32> to vector<8x128xf32>
    %39 = arith.truncf %35 : vector<8x128xf32> to vector<8x128xbf16>
    %cst_27 = arith.constant dense<0.000000e+00> : vector<8x128xf32>
    %40 = tpu.matmul %39, %12, %cst_27 {dimension_numbers = #tpu.dot_dimension_numbers<[1], [0], [0], [1], [0, 0, 1, 1], [], []>} : vector<8x128xbf16>, vector<128x128xbf16>, vector<8x128xf32> -> vector<8x128xf32>
    %41 = arith.addf %38, %40 : vector<8x128xf32>
    %42 = arith.index_cast %c2_i32 : i32 to index
    %c0_28 = arith.constant 0 : index
    %c0_29 = arith.constant 0 : index
    %43 = vector.load %arg11[%42, %c0_28, %c0_29] : memref<8x8x128xf32, #tpu.memory_space<vmem>>, vector<1x8x128xf32>
    %44 = vector.shape_cast %43 : vector<1x8x128xf32> to vector<8x128xf32>
    %45 = vector.shape_cast %41 : vector<8x128xf32> to vector<1x8x128xf32>
    tpu.vector_store %arg11[%42, %c0_28, %c0_29], %45 {strides = array<i32>} : memref<8x8x128xf32, #tpu.memory_space<vmem>>, vector<1x8x128xf32>,
    %46 = math.tanh %41 : vector<8x128xf32>
    %c3_i32 = arith.constant 3 : i32
    %47 = arith.index_cast %c3_i32 : i32 to index
    %c0_30 = arith.constant 0 : index
    %c0_31 = arith.constant 0 : index
    %48 = vector.load %arg11[%47, %c0_30, %c0_31] : memref<8x8x128xf32, #tpu.memory_space<vmem>>, vector<1x8x128xf32>
    %49 = vector.shape_cast %48 : vector<1x8x128xf32> to vector<8x128xf32>
    %50 = arith.truncf %46 : vector<8x128xf32> to vector<8x128xbf16>
    %cst_32 = arith.constant dense<0.000000e+00> : vector<8x128xf32>
    %51 = tpu.matmul %50, %12, %cst_32 {dimension_numbers = #tpu.dot_dimension_numbers<[1], [0], [0], [1], [0, 0, 1, 1], [], []>} : vector<8x128xbf16>, vector<128x128xbf16>, vector<8x128xf32> -> vector<8x128xf32>
    %52 = arith.addf %49, %51 : vector<8x128xf32>
    %53 = arith.index_cast %c3_i32 : i32 to index
    %c0_33 = arith.constant 0 : index
    %c0_34 = arith.constant 0 : index
    %54 = vector.load %arg11[%53, %c0_33, %c0_34] : memref<8x8x128xf32, #tpu.memory_space<vmem>>, vector<1x8x128xf32>
    %55 = vector.shape_cast %54 : vector<1x8x128xf32> to vector<8x128xf32>
    %56 = vector.shape_cast %52 : vector<8x128xf32> to vector<1x8x128xf32>
    tpu.vector_store %arg11[%53, %c0_33, %c0_34], %56 {strides = array<i32>} : memref<8x8x128xf32, #tpu.memory_space<vmem>>, vector<1x8x128xf32>,
    %57 = math.tanh %52 : vector<8x128xf32>
    %c4_i32 = arith.constant 4 : i32
    %58 = arith.index_cast %c4_i32 : i32 to index
    %c0_35 = arith.constant 0 : index
    %c0_36 = arith.constant 0 : index
    %59 = vector.load %arg11[%58, %c0_35, %c0_36] : memref<8x8x128xf32, #tpu.memory_space<vmem>>, vector<1x8x128xf32>
    %60 = vector.shape_cast %59 : vector<1x8x128xf32> to vector<8x128xf32>
    %61 = arith.truncf %57 : vector<8x128xf32> to vector<8x128xbf16>
    %cst_37 = arith.constant dense<0.000000e+00> : vector<8x128xf32>
    %62 = tpu.matmul %61, %12, %cst_37 {dimension_numbers = #tpu.dot_dimension_numbers<[1], [0], [0], [1], [0, 0, 1, 1], [], []>} : vector<8x128xbf16>, vector<128x128xbf16>, vector<8x128xf32> -> vector<8x128xf32>
    %63 = arith.addf %60, %62 : vector<8x128xf32>
    %64 = arith.index_cast %c4_i32 : i32 to index
    %c0_38 = arith.constant 0 : index
    %c0_39 = arith.constant 0 : index
    %65 = vector.load %arg11[%64, %c0_38, %c0_39] : memref<8x8x128xf32, #tpu.memory_space<vmem>>, vector<1x8x128xf32>
    %66 = vector.shape_cast %65 : vector<1x8x128xf32> to vector<8x128xf32>
    %67 = vector.shape_cast %63 : vector<8x128xf32> to vector<1x8x128xf32>
    tpu.vector_store %arg11[%64, %c0_38, %c0_39], %67 {strides = array<i32>} : memref<8x8x128xf32, #tpu.memory_space<vmem>>, vector<1x8x128xf32>,
    %68 = math.tanh %63 : vector<8x128xf32>
    %c5_i32 = arith.constant 5 : i32
    %69 = arith.index_cast %c5_i32 : i32 to index
    %c0_40 = arith.constant 0 : index
    %c0_41 = arith.constant 0 : index
    %70 = vector.load %arg11[%69, %c0_40, %c0_41] : memref<8x8x128xf32, #tpu.memory_space<vmem>>, vector<1x8x128xf32>
    %71 = vector.shape_cast %70 : vector<1x8x128xf32> to vector<8x128xf32>
    %72 = arith.truncf %68 : vector<8x128xf32> to vector<8x128xbf16>
    %cst_42 = arith.constant dense<0.000000e+00> : vector<8x128xf32>
    %73 = tpu.matmul %72, %12, %cst_42 {dimension_numbers = #tpu.dot_dimension_numbers<[1], [0], [0], [1], [0, 0, 1, 1], [], []>} : vector<8x128xbf16>, vector<128x128xbf16>, vector<8x128xf32> -> vector<8x128xf32>
    %74 = arith.addf %71, %73 : vector<8x128xf32>
    %75 = arith.index_cast %c5_i32 : i32 to index
    %c0_43 = arith.constant 0 : index
    %c0_44 = arith.constant 0 : index
    %76 = vector.load %arg11[%75, %c0_43, %c0_44] : memref<8x8x128xf32, #tpu.memory_space<vmem>>, vector<1x8x128xf32>
    %77 = vector.shape_cast %76 : vector<1x8x128xf32> to vector<8x128xf32>
    %78 = vector.shape_cast %74 : vector<8x128xf32> to vector<1x8x128xf32>
    tpu.vector_store %arg11[%75, %c0_43, %c0_44], %78 {strides = array<i32>} : memref<8x8x128xf32, #tpu.memory_space<vmem>>, vector<1x8x128xf32>,
    %79 = math.tanh %74 : vector<8x128xf32>
    %c6_i32 = arith.constant 6 : i32
    %80 = arith.index_cast %c6_i32 : i32 to index
    %c0_45 = arith.constant 0 : index
    %c0_46 = arith.constant 0 : index
    %81 = vector.load %arg11[%80, %c0_45, %c0_46] : memref<8x8x128xf32, #tpu.memory_space<vmem>>, vector<1x8x128xf32>
    %82 = vector.shape_cast %81 : vector<1x8x128xf32> to vector<8x128xf32>
    %83 = arith.truncf %79 : vector<8x128xf32> to vector<8x128xbf16>
    %cst_47 = arith.constant dense<0.000000e+00> : vector<8x128xf32>
    %84 = tpu.matmul %83, %12, %cst_47 {dimension_numbers = #tpu.dot_dimension_numbers<[1], [0], [0], [1], [0, 0, 1, 1], [], []>} : vector<8x128xbf16>, vector<128x128xbf16>, vector<8x128xf32> -> vector<8x128xf32>
    %85 = arith.addf %82, %84 : vector<8x128xf32>
    %86 = arith.index_cast %c6_i32 : i32 to index
    %c0_48 = arith.constant 0 : index
    %c0_49 = arith.constant 0 : index
    %87 = vector.load %arg11[%86, %c0_48, %c0_49] : memref<8x8x128xf32, #tpu.memory_space<vmem>>, vector<1x8x128xf32>
    %88 = vector.shape_cast %87 : vector<1x8x128xf32> to vector<8x128xf32>
    %89 = vector.shape_cast %85 : vector<8x128xf32> to vector<1x8x128xf32>
    tpu.vector_store %arg11[%86, %c0_48, %c0_49], %89 {strides = array<i32>} : memref<8x8x128xf32, #tpu.memory_space<vmem>>, vector<1x8x128xf32>,
    %90 = math.tanh %85 : vector<8x128xf32>
    %c7_i32 = arith.constant 7 : i32
    %91 = arith.index_cast %c7_i32 : i32 to index
    %c0_50 = arith.constant 0 : index
    %c0_51 = arith.constant 0 : index
    %92 = vector.load %arg11[%91, %c0_50, %c0_51] : memref<8x8x128xf32, #tpu.memory_space<vmem>>, vector<1x8x128xf32>
    %93 = vector.shape_cast %92 : vector<1x8x128xf32> to vector<8x128xf32>
    %94 = arith.truncf %90 : vector<8x128xf32> to vector<8x128xbf16>
    %cst_52 = arith.constant dense<0.000000e+00> : vector<8x128xf32>
    %95 = tpu.matmul %94, %12, %cst_52 {dimension_numbers = #tpu.dot_dimension_numbers<[1], [0], [0], [1], [0, 0, 1, 1], [], []>} : vector<8x128xbf16>, vector<128x128xbf16>, vector<8x128xf32> -> vector<8x128xf32>
    %96 = arith.addf %93, %95 : vector<8x128xf32>
    %97 = arith.index_cast %c7_i32 : i32 to index
    %c0_53 = arith.constant 0 : index
    %c0_54 = arith.constant 0 : index
    %98 = vector.load %arg11[%97, %c0_53, %c0_54] : memref<8x8x128xf32, #tpu.memory_space<vmem>>, vector<1x8x128xf32>
    %99 = vector.shape_cast %98 : vector<1x8x128xf32> to vector<8x128xf32>
    %100 = vector.shape_cast %96 : vector<8x128xf32> to vector<1x8x128xf32>
    tpu.vector_store %arg11[%97, %c0_53, %c0_54], %100 {strides = array<i32>} : memref<8x8x128xf32, #tpu.memory_space<vmem>>, vector<1x8x128xf32>,
    %101 = math.tanh %96 : vector<8x128xf32>
    %c8_i32 = arith.constant 8 : i32
    %c0_55 = arith.constant 0 : index
    %c0_56 = arith.constant 0 : index
    %102 = vector.load %arg10[%c0_55, %c0_56] : memref<8x128xf32, #tpu.memory_space<vmem>>, vector<8x128xf32>
    tpu.vector_store %arg10[%c0_55, %c0_56], %101 {strides = array<i32>} : memref<8x128xf32, #tpu.memory_space<vmem>>, vector<8x128xf32>,
    %c0_57 = arith.constant 0 : index
    %c0_58 = arith.constant 0 : index
    %c0_59 = arith.constant 0 : index
    %103 = vector.load %arg11[%c0_57, %c0_58, %c0_59] : memref<8x8x128xf32, #tpu.memory_space<vmem>>, vector<8x8x128xf32>
    %104 = arith.truncf %103 : vector<8x8x128xf32> to vector<8x8x128xbf16>
    %105 = vector.shape_cast %104 : vector<8x8x128xbf16> to vector<64x128xbf16>
    %c0_60 = arith.constant 0 : index
    %c0_61 = arith.constant 0 : index
    %106 = vector.load %arg6[%c0_60, %c0_61] : memref<128x128xbf16, #tpu.memory_space<vmem>>, vector<128x128xbf16>
    %cst_62 = arith.constant dense<0.000000e+00> : vector<64x128xf32>
    %107 = tpu.matmul %105, %106, %cst_62 {dimension_numbers = #tpu.dot_dimension_numbers<[1], [0], [0], [1], [0, 0, 1, 1], [], []>} : vector<64x128xbf16>, vector<128x128xbf16>, vector<64x128xf32> -> vector<64x128xf32>
    %c0_63 = arith.constant 0 : index
    %c0_64 = arith.constant 0 : index
    %108 = vector.load %arg8[%c0_63, %c0_64] : memref<1x128xf32, #tpu.memory_space<vmem>>, vector<1x128xf32>
    %109 = vector.broadcast %108 : vector<1x128xf32> to vector<64x128xf32>
    %110 = arith.addf %107, %109 : vector<64x128xf32>
    %111 = math.tanh %110 : vector<64x128xf32>
    %112 = vector.shape_cast %111 : vector<64x128xf32> to vector<8x8x128xf32>
    %113 = arith.truncf %112 : vector<8x8x128xf32> to vector<8x8x128xbf16>
    %c0_65 = arith.constant 0 : index
    %c0_66 = arith.constant 0 : index
    %c0_67 = arith.constant 0 : index
    %114 = vector.load %arg9[%c0_65, %c0_66, %c0_67] : memref<8x8x128xbf16, #tpu.memory_space<vmem>>, vector<8x8x128xbf16>
    tpu.vector_store %arg9[%c0_65, %c0_66, %c0_67], %113 {strides = array<i32>} : memref<8x8x128xbf16, #tpu.memory_space<vmem>>, vector<8x8x128xbf16>,
    return
  }
  func.func @transform_0(%arg0: i32, %arg1: i32) -> (i32, i32, i32) {
    %c0_i32 = arith.constant 0 : i32
    %c0_i32_0 = arith.constant 0 : i32
    return %arg1, %arg0, %c0_i32 : i32, i32, i32
  }
  func.func @transform_1(%arg0: i32, %arg1: i32) -> (i32, i32) {
    %c0_i32 = arith.constant 0 : i32
    %c0_i32_0 = arith.constant 0 : i32
    return %arg0, %c0_i32 : i32, i32
  }
  func.func @transform_2(%arg0: i32, %arg1: i32) -> (i32, i32) {
    %c0_i32 = arith.constant 0 : i32
    %c0_i32_0 = arith.constant 0 : i32
    %c0_i32_1 = arith.constant 0 : i32
    return %c0_i32, %c0_i32_0 : i32, i32
  }
  func.func @transform_3(%arg0: i32, %arg1: i32) -> (i32, i32) {
    %c0_i32 = arith.constant 0 : i32
    %c0_i32_0 = arith.constant 0 : i32
    %c0_i32_1 = arith.constant 0 : i32
    return %c0_i32, %c0_i32_0 : i32, i32
  }
  func.func @transform_4(%arg0: i32, %arg1: i32) -> (i32, i32) {
    %c0_i32 = arith.constant 0 : i32
    %c0_i32_0 = arith.constant 0 : i32
    %c0_i32_1 = arith.constant 0 : i32
    return %c0_i32, %c0_i32_0 : i32, i32
  }
  func.func @transform_5(%arg0: i32, %arg1: i32) -> (i32, i32) {
    %c0_i32 = arith.constant 0 : i32
    %c0_i32_0 = arith.constant 0 : i32
    %c0_i32_1 = arith.constant 0 : i32
    return %c0_i32, %c0_i32_0 : i32, i32
  }
  func.func @transform_6(%arg0: i32, %arg1: i32) -> (i32, i32) {
    %c0_i32 = arith.constant 0 : i32
    %c0_i32_0 = arith.constant 0 : i32
    %c0_i32_1 = arith.constant 0 : i32
    return %c0_i32, %c0_i32_0 : i32, i32
  }
  func.func @transform_7(%arg0: i32, %arg1: i32) -> (i32, i32, i32) {
    %c0_i32 = arith.constant 0 : i32
    %c0_i32_0 = arith.constant 0 : i32
    return %arg1, %arg0, %c0_i32 : i32, i32, i32
  }
  func.func @transform_8(%arg0: i32, %arg1: i32) -> (i32, i32) {
    %c0_i32 = arith.constant 0 : i32
    %c0_i32_0 = arith.constant 0 : i32
    return %arg0, %c0_i32 : i32, i32
  }
}

</mosaic_0001>

<llo_original>
// kernel: tpu_custom_call.1
$region0: #{tpu_custom_call.1}
  #allocation0 [shape = 'u32[]', space=smem, size = 0x4, offset = 0x4, fixed_abs, tag = 'smem constant byte address 0x4 - core index']
  #allocation1 [shape = 'u32[144,128]{1,0:T(1,128)}', space=vmem, size = 0x12000, scoped, tag = 'internal scratch']
  #allocation2 [shape = 'f32[8,8,128]{2,1,0:T(8,128)}', space=vmem, size = 0x8000, scoped, tag = 'scratch operand']
  %s0 = inlined_call_operand.hbm [shape: bf16[8,8,128], index: 0, kind: input, shape index: {}]
  %s1 = inlined_call_operand.hbm [shape: f32[8,128], index: 1, kind: input, shape index: {}]
  %s2 = inlined_call_operand.hbm [shape: bf16[128,128], index: 2, kind: input, shape index: {}]
  %s3 = inlined_call_operand.hbm [shape: bf16[128,128], index: 3, kind: input, shape index: {}]
  %s4 = inlined_call_operand.hbm [shape: bf16[128,128], index: 4, kind: input, shape index: {}]
  %s5 = inlined_call_operand.vmem [shape: f32[1,128], index: 5, kind: input, shape index: {}]
  %s6 = inlined_call_operand.vmem [shape: f32[1,128], index: 6, kind: input, shape index: {}]
  %s7 = inlined_call_operand.hbm [shape: bf16[8,8,128], index: 7, kind: output, shape index: {0}]
  %s8 = inlined_call_operand.hbm [shape: f32[8,128], index: 8, kind: output, shape index: {1}]
  %9 = xla_tuple %s7, %s8
  %s10 = sld [smem:[#allocation0]]
  $region70: #{tpu_custom_call.1} parent=0
    _
  %s12 = ssub.s32 1, %s10
  %s13 = scalar_select 0, %s12, %s10
  $region1: #{tpu_custom_call.1} parent=0
    #allocation3 [shape = 'u8[16384]{0}', space=vmem, size = 0x4000, scoped, tag = 'input window, operand 0, single buffered']
    #allocation4 [shape = 's32[1]{0}', space=sflag, size = 0x4, scoped, tag = 'scoped memory for tpu_custom_call.1']
    #allocation5 [shape = 's32[1]{0}', space=sflag, size = 0x4, scoped, tag = 'scoped memory for tpu_custom_call.1']
    #allocation6 [shape = 'u8[4096]{0}', space=vmem, size = 0x1000, scoped, tag = 'input window, operand 1, single buffered']
    #allocation7 [shape = 's32[1]{0}', space=sflag, size = 0x4, scoped, tag = 'scoped memory for tpu_custom_call.1']
    #allocation8 [shape = 'u8[32768]{0}', space=vmem, size = 0x8000, scoped, tag = 'input window, operand 2, single buffered']
    #allocation9 [shape = 'u8[32768]{0}', space=vmem, size = 0x8000, scoped, tag = 'input window, operand 3, single buffered']
    #allocation10 [shape = 's32[1]{0}', space=sflag, size = 0x4, scoped, tag = 'scoped memory for tpu_custom_call.1']
    #allocation11 [shape = 'u8[32768]{0}', space=vmem, size = 0x8000, scoped, tag = 'input window, operand 4, single buffered']
    #allocation12 [shape = 'u8[16384]{0}', space=vmem, size = 0x4000, scoped, tag = 'output window, operand 0, single buffered']
    #allocation13 [shape = 'u8[4096]{0}', space=vmem, size = 0x1000, scoped, tag = 'output window, operand 1, single buffered']
    #allocation14 [shape = 's32[1]{0}', space=sflag, size = 0x4, scoped, tag = 'scoped memory for tpu_custom_call.1']
    %14 = vsyncpa [#allocation4], 0
    %15 = vsyncpa [#allocation7], 0
    %16 = vsyncpa [#allocation10], 0
    %17 = vsyncpa [#allocation5], 0
    %18 = vsyncpa [#allocation14], 0
    // Predicated region
    $region2: #{tpu_custom_call.1} parent=1 // pred_check
      _
    $region3: #{tpu_custom_call.1} parent=1 // pred_check_branch
      %20 = sbr.rel (0) target = $region5
    $region4: #{tpu_custom_call.1} parent=1 // pred_region
      %s22 = ssub.s32 512, 512
      %23 = vsyncadd [#allocation4], %s22
      %s24 = sshll.u32 [#allocation3], 4
      %s25 = int_to_ptr.vmem [resolvable:$true] %s24
      %30 = dma.hbm_to_vmem [thread:$0]  %s0, 512, %s25, [#allocation4], 64, 64, 4
    $region5: #{tpu_custom_call.1} parent=1 // pred_fallthru
      _
    // Predicated region
    $region6: #{tpu_custom_call.1} parent=1 // pred_check
      _
    $region7: #{tpu_custom_call.1} parent=1 // pred_check_branch
      %32 = sbr.rel (0) target = $region9
    $region8: #{tpu_custom_call.1} parent=1 // pred_region
      %s34 = ssub.s32 128, 128
      %35 = vsyncadd [#allocation7], %s34
      %s37 = sshll.u32 [#allocation6], 4
      %s38 = int_to_ptr.vmem [resolvable:$true] %s37
      %40 = dma.hbm_to_vmem [thread:$0]  %s1, 128, %s38, [#allocation7]
    $region9: #{tpu_custom_call.1} parent=1 // pred_fallthru
      _
    // Predicated region
    $region10: #{tpu_custom_call.1} parent=1 // pred_check
      _
    $region11: #{tpu_custom_call.1} parent=1 // pred_check_branch
      %42 = sbr.rel (0) target = $region13
    $region12: #{tpu_custom_call.1} parent=1 // pred_region
      %s44 = ssub.s32 1024, 1024
      %45 = vsyncadd [#allocation7], %s44
      %s46 = sshll.u32 [#allocation8], 4
      %s47 = int_to_ptr.vmem [resolvable:$true] %s46
      %52 = dma.hbm_to_vmem [thread:$0]  %s2, 1024, %s47, [#allocation7], 64, 64, 4
    $region13: #{tpu_custom_call.1} parent=1 // pred_fallthru
      _
    // Predicated region
    $region14: #{tpu_custom_call.1} parent=1 // pred_check
      _
    $region15: #{tpu_custom_call.1} parent=1 // pred_check_branch
      %54 = sbr.rel (0) target = $region17
    $region16: #{tpu_custom_call.1} parent=1 // pred_region
      %s56 = ssub.s32 1024, 1024
      %57 = vsyncadd [#allocation10], %s56
      %s58 = sshll.u32 [#allocation9], 4
      %s59 = int_to_ptr.vmem [resolvable:$true] %s58
      %64 = dma.hbm_to_vmem [thread:$0]  %s3, 1024, %s59, [#allocation10], 64, 64, 4
    $region17: #{tpu_custom_call.1} parent=1 // pred_fallthru
      _
    // Predicated region
    $region18: #{tpu_custom_call.1} parent=1 // pred_check
      _
    $region19: #{tpu_custom_call.1} parent=1 // pred_check_branch
      %66 = sbr.rel (0) target = $region21
    $region20: #{tpu_custom_call.1} parent=1 // pred_region
      %s68 = ssub.s32 1024, 1024
      %69 = vsyncadd [#allocation10], %s68
      %s70 = sshll.u32 [#allocation11], 4
      %s71 = int_to_ptr.vmem [resolvable:$true] %s70
      %76 = dma.hbm_to_vmem [thread:$0]  %s4, 1024, %s71, [#allocation10], 64, 64, 4
    $region21: #{tpu_custom_call.1} parent=1 // pred_fallthru
      _
    // Predicated region
    $region22: #{tpu_custom_call.1} parent=1 // pred_check
      _
    $region23: #{tpu_custom_call.1} parent=1 // pred_check_branch
      %78 = sbr.rel (0) target = $region25
    $region24: #{tpu_custom_call.1} parent=1 // pred_region
      _
    $region25: #{tpu_custom_call.1} parent=1 // pred_fallthru
      _
    // Predicated region
    $region26: #{tpu_custom_call.1} parent=1 // pred_check
      _
    $region27: #{tpu_custom_call.1} parent=1 // pred_check_branch
      %80 = sbr.rel (0) target = $region29
    $region28: #{tpu_custom_call.1} parent=1 // pred_region
      _
    $region29: #{tpu_custom_call.1} parent=1 // pred_fallthru
      _
    // Predicated region
    $region30: #{tpu_custom_call.1} parent=1 // pred_check
      _
    $region31: #{tpu_custom_call.1} parent=1 // pred_check_branch
      %82 = sbr.rel (0) target = $region33
    $region32: #{tpu_custom_call.1} parent=1 // pred_region
      %83 = dma.done [#allocation4], 512
    $region33: #{tpu_custom_call.1} parent=1 // pred_fallthru
      _
    // Predicated region
    $region34: #{tpu_custom_call.1} parent=1 // pred_check
      _
    $region35: #{tpu_custom_call.1} parent=1 // pred_check_branch
      %85 = sbr.rel (0) target = $region37
    $region36: #{tpu_custom_call.1} parent=1 // pred_region
      %86 = dma.done [#allocation7], 128
    $region37: #{tpu_custom_call.1} parent=1 // pred_fallthru
      _
    // Predicated region
    $region38: #{tpu_custom_call.1} parent=1 // pred_check
      _
    $region39: #{tpu_custom_call.1} parent=1 // pred_check_branch
      %88 = sbr.rel (0) target = $region41
    $region40: #{tpu_custom_call.1} parent=1 // pred_region
      %89 = dma.done [#allocation7], 1024
    $region41: #{tpu_custom_call.1} parent=1 // pred_fallthru
      _
    // Predicated region
    $region42: #{tpu_custom_call.1} parent=1 // pred_check
      _
    $region43: #{tpu_custom_call.1} parent=1 // pred_check_branch
      %91 = sbr.rel (0) target = $region45
    $region44: #{tpu_custom_call.1} parent=1 // pred_region
      %92 = dma.done [#allocation10], 1024
    $region45: #{tpu_custom_call.1} parent=1 // pred_fallthru
      _
    // Predicated region
    $region46: #{tpu_custom_call.1} parent=1 // pred_check
      _
    $region47: #{tpu_custom_call.1} parent=1 // pred_check_branch
      %94 = sbr.rel (0) target = $region49
    $region48: #{tpu_custom_call.1} parent=1 // pred_region
      %95 = dma.done [#allocation10], 1024
    $region49: #{tpu_custom_call.1} parent=1 // pred_fallthru
      _
    %p97 = scmp.eq.s32.totalorder 0, 0
    // Predicated region
    $region50: #{tpu_custom_call.1} parent=1 // pred_check
      %p98 = pneg %p97
    $region51: #{tpu_custom_call.1} parent=1 // pred_check_branch
      %100 = sbr.rel (%p98) target = $region53
    $region52: #{tpu_custom_call.1} parent=1 // pred_region
      %v101 = vld [vmem:[#allocation6] sm:$0xff]
      %102 = vst [vmem:[#allocation13] sm:$0xff] %v101
    $region53: #{tpu_custom_call.1} parent=1 // pred_fallthru
      _
    %v103 = vld [vmem:[#allocation3] sm:$0xf]
    %v104 = vld [vmem:[#allocation3 + $0x4] sm:$0xf]
    %v105 = vld [vmem:[#allocation3 + $0x8] sm:$0xf]
    %v106 = vld [vmem:[#allocation3 + $0xc] sm:$0xf]
    %v107 = vld [vmem:[#allocation3 + $0x10] sm:$0xf]
    %v108 = vld [vmem:[#allocation3 + $0x14] sm:$0xf]
    %v109 = vld [vmem:[#allocation3 + $0x18] sm:$0xf]
    %v110 = vld [vmem:[#allocation3 + $0x1c] sm:$0xf]
    %v111 = vld [vmem:[#allocation8] sm:$0xf]
    %v112 = vld [vmem:[#allocation8 + $0x4] sm:$0xf]
    %v113 = vld [vmem:[#allocation8 + $0x8] sm:$0xf]
    %v114 = vld [vmem:[#allocation8 + $0xc] sm:$0xf]
    %v115 = vld [vmem:[#allocation8 + $0x10] sm:$0xf]
    %v116 = vld [vmem:[#allocation8 + $0x14] sm:$0xf]
    %v117 = vld [vmem:[#allocation8 + $0x18] sm:$0xf]
    %v118 = vld [vmem:[#allocation8 + $0x1c] sm:$0xf]
    %v119 = vld [vmem:[#allocation8 + $0x20] sm:$0xf]
    %v120 = vld [vmem:[#allocation8 + $0x24] sm:$0xf]
    %v121 = vld [vmem:[#allocation8 + $0x28] sm:$0xf]
    %v122 = vld [vmem:[#allocation8 + $0x2c] sm:$0xf]
    %v123 = vld [vmem:[#allocation8 + $0x30] sm:$0xf]
    %v124 = vld [vmem:[#allocation8 + $0x34] sm:$0xf]
    %v125 = vld [vmem:[#allocation8 + $0x38] sm:$0xf]
    %v126 = vld [vmem:[#allocation8 + $0x3c] sm:$0xf]
    %v127 = vld [vmem:[%s5] sm:$0x1]
    %v129 = vlaneseq
    %v130 = vshrl.u32 %v129, 7
    %v131 = vsub.s32 0, %v130
    %v132 = vrot.slane %v127, %v131
    %v142 = vunpack.c.l.b16 %v103
    %v143 = vunpack.c.l.b16 %v104
    %v144 = vunpack.c.l.b16 %v105
    %v145 = vunpack.c.l.b16 %v106
    %v146 = vunpack.c.l.b16 %v107
    %v147 = vunpack.c.l.b16 %v108
    %v148 = vunpack.c.l.b16 %v109
    %v149 = vunpack.c.l.b16 %v110
    %v150 = vpack.c.b16 %v143, %v142
    %v151 = vpack.c.b16 %v145, %v144
    %v152 = vpack.c.b16 %v147, %v146
    %v153 = vpack.c.b16 %v149, %v148
    %v174 = vunpack.c.l.b16 %v111
    %v175 = vunpack.c.l.b16 %v112
    %v176 = vunpack.c.l.b16 %v113
    %v177 = vunpack.c.l.b16 %v114
    %v178 = vunpack.c.l.b16 %v115
    %v179 = vunpack.c.l.b16 %v116
    %v180 = vunpack.c.l.b16 %v117
    %v181 = vunpack.c.l.b16 %v118
    %v182 = vunpack.c.l.b16 %v119
    %v183 = vunpack.c.l.b16 %v120
    %v184 = vunpack.c.l.b16 %v121
    %v185 = vunpack.c.l.b16 %v122
    %v186 = vunpack.c.l.b16 %v123
    %v187 = vunpack.c.l.b16 %v124
    %v188 = vunpack.c.l.b16 %v125
    %v189 = vunpack.c.l.b16 %v126
    %v190 = vpack.c.b16 %v175, %v174
    %v191 = vpack.c.b16 %v177, %v176
    %v192 = vpack.c.b16 %v179, %v178
    %v193 = vpack.c.b16 %v181, %v180
    %v194 = vpack.c.b16 %v183, %v182
    %v195 = vpack.c.b16 %v185, %v184
    %v196 = vpack.c.b16 %v187, %v186
    %v197 = vpack.c.b16 %v189, %v188
    %206 = vmatprep.subr.bf16.mxu0 0
    %207 = vmatpush1.bf16.msra.mxu0 %v190
    %208 = vmatprep.subr.bf16.mxu0 0
    %209 = vmatpush1.bf16.msra.mxu0 %v191
    %210 = vmatprep.subr.bf16.mxu0 0
    %211 = vmatpush1.bf16.msra.mxu0 %v192
    %212 = vmatprep.subr.bf16.mxu0 0
    %213 = vmatpush1.bf16.msra.mxu0 %v193
    %214 = vmatprep.subr.bf16.mxu0 0
    %215 = vmatpush1.bf16.msra.mxu0 %v194
    %216 = vmatprep.subr.bf16.mxu0 0
    %217 = vmatpush1.bf16.msra.mxu0 %v195
    %218 = vmatprep.subr.bf16.mxu0 0
    %219 = vmatpush1.bf16.msra.mxu0 %v196
    %220 = vmatprep.subr.bf16.mxu0 0
    %221 = vmatpush1.bf16.msra.mxu0 %v197
    %222 = vmatprep.subr.bf16.mxu0 0
    %223 = vmatpush1.bf16.msra.mxu0 0
    %224 = vmatprep.subr.bf16.mxu0 0
    %225 = vmatpush1.bf16.msra.mxu0 0
    %226 = vmatprep.subr.bf16.mxu0 0
    %227 = vmatpush1.bf16.msra.mxu0 0
    %228 = vmatprep.subr.bf16.mxu0 0
    %229 = vmatpush1.bf16.msra.mxu0 0
    %230 = vmatprep.subr.bf16.mxu0 0
    %231 = vmatpush1.bf16.msra.mxu0 0
    %232 = vmatprep.subr.bf16.mxu0 0
    %233 = vmatpush1.bf16.msra.mxu0 0
    %234 = vmatprep.subr.bf16.mxu0 0
    %235 = vmatpush1.bf16.msra.mxu0 0
    %236 = vmatprep.subr.bf16.mxu0 0
    %237 = vmatpush1.bf16.msra.mxu0 0
    %238 = vmatprep.mubr.bf16.mxu0 0
    %239 = vmatmul.mubr.bf16.gmra.mrb[0].mxu0 %v150
    %v240 = vpop.f32.mrb[0].mxu0
    %v241 = vadd.f32 %v132, %v240
    %v242 = vpop.f32.mrb[0].mxu0
    %v243 = vpop.f32.mrb[0].mxu0
    %v244 = vadd.f32 %v132, %v243
    %v245 = vpop.f32.mrb[0].mxu0
    %246 = vmatprep.mubr.bf16.mxu0 0
    %247 = vmatmul.mubr.bf16.gmra.mrb[0].mxu0 %v151
    %v248 = vpop.f32.mrb[0].mxu0
    %v249 = vadd.f32 %v132, %v248
    %v250 = vpop.f32.mrb[0].mxu0
    %v251 = vpop.f32.mrb[0].mxu0
    %v252 = vadd.f32 %v132, %v251
    %v253 = vpop.f32.mrb[0].mxu0
    %254 = vmatprep.mubr.bf16.mxu0 0
    %255 = vmatmul.mubr.bf16.gmra.mrb[0].mxu0 %v152
    %v256 = vpop.f32.mrb[0].mxu0
    %v257 = vadd.f32 %v132, %v256
    %v258 = vpop.f32.mrb[0].mxu0
    %v259 = vpop.f32.mrb[0].mxu0
    %v260 = vadd.f32 %v132, %v259
    %v261 = vpop.f32.mrb[0].mxu0
    %262 = vmatprep.mubr.bf16.mxu0 0
    %263 = vmatmul.mubr.bf16.gmra.mrb[0].mxu0 %v153
    %v264 = vpop.f32.mrb[0].mxu0
    %v265 = vadd.f32 %v132, %v264
    %v266 = vpop.f32.mrb[0].mxu0
    %v267 = vpop.f32.mrb[0].mxu0
    %v268 = vadd.f32 %v132, %v267
    %v269 = vpop.f32.mrb[0].mxu0
    %270 = vdwg.mxu0
    %271 = vst [vmem:[#allocation2] sm:$0xff] %v241
    %272 = vst [vmem:[#allocation2 + $0x8] sm:$0xff] %v244
    %273 = vst [vmem:[#allocation2 + $0x10] sm:$0xff] %v249
    %274 = vst [vmem:[#allocation2 + $0x18] sm:$0xff] %v252
    %275 = vst [vmem:[#allocation2 + $0x20] sm:$0xff] %v257
    %276 = vst [vmem:[#allocation2 + $0x28] sm:$0xff] %v260
    %277 = vst [vmem:[#allocation2 + $0x30] sm:$0xff] %v265
    %278 = vst [vmem:[#allocation2 + $0x38] sm:$0xff] %v268
    %v279 = vld [vmem:[#allocation9] sm:$0xf]
    %v280 = vld [vmem:[#allocation9 + $0x4] sm:$0xf]
    %v281 = vld [vmem:[#allocation9 + $0x8] sm:$0xf]
    %v282 = vld [vmem:[#allocation9 + $0xc] sm:$0xf]
    %v283 = vld [vmem:[#allocation9 + $0x10] sm:$0xf]
    %v284 = vld [vmem:[#allocation9 + $0x14] sm:$0xf]
    %v285 = vld [vmem:[#allocation9 + $0x18] sm:$0xf]
    %v286 = vld [vmem:[#allocation9 + $0x1c] sm:$0xf]
    %v287 = vld [vmem:[#allocation9 + $0x20] sm:$0xf]
    %v288 = vld [vmem:[#allocation9 + $0x24] sm:$0xf]
    %v289 = vld [vmem:[#allocation9 + $0x28] sm:$0xf]
    %v290 = vld [vmem:[#allocation9 + $0x2c] sm:$0xf]
    %v291 = vld [vmem:[#allocation9 + $0x30] sm:$0xf]
    %v292 = vld [vmem:[#allocation9 + $0x34] sm:$0xf]
    %v293 = vld [vmem:[#allocation9 + $0x38] sm:$0xf]
    %v294 = vld [vmem:[#allocation9 + $0x3c] sm:$0xf]
    %v295 = vld [vmem:[#allocation13] sm:$0xff]
    %v296 = vld [vmem:[#allocation2] sm:$0xff]
    %v297 = vpack.c.bf16 %v295, %v295
    %v314 = vunpack.c.l.b16 %v279
    %v315 = vunpack.c.l.b16 %v280
    %v316 = vunpack.c.l.b16 %v281
    %v317 = vunpack.c.l.b16 %v282
    %v318 = vunpack.c.l.b16 %v283
    %v319 = vunpack.c.l.b16 %v284
    %v320 = vunpack.c.l.b16 %v285
    %v321 = vunpack.c.l.b16 %v286
    %v322 = vunpack.c.l.b16 %v287
    %v323 = vunpack.c.l.b16 %v288
    %v324 = vunpack.c.l.b16 %v289
    %v325 = vunpack.c.l.b16 %v290
    %v326 = vunpack.c.l.b16 %v291
    %v327 = vunpack.c.l.b16 %v292
    %v328 = vunpack.c.l.b16 %v293
    %v329 = vunpack.c.l.b16 %v294
    %v330 = vpack.c.b16 %v315, %v314
    %v331 = vpack.c.b16 %v317, %v316
    %v332 = vpack.c.b16 %v319, %v318
    %v333 = vpack.c.b16 %v321, %v320
    %v334 = vpack.c.b16 %v323, %v322
    %v335 = vpack.c.b16 %v325, %v324
    %v336 = vpack.c.b16 %v327, %v326
    %v337 = vpack.c.b16 %v329, %v328
    %346 = vmatprep.subr.bf16.mxu0 0
    %347 = vmatpush1.bf16.msra.mxu0 %v330
    %348 = vmatprep.subr.bf16.mxu0 0
    %349 = vmatpush1.bf16.msra.mxu0 %v331
    %350 = vmatprep.subr.bf16.mxu0 0
    %351 = vmatpush1.bf16.msra.mxu0 %v332
    %352 = vmatprep.subr.bf16.mxu0 0
    %353 = vmatpush1.bf16.msra.mxu0 %v333
    %354 = vmatprep.subr.bf16.mxu0 0
    %355 = vmatpush1.bf16.msra.mxu0 %v334
    %356 = vmatprep.subr.bf16.mxu0 0
    %357 = vmatpush1.bf16.msra.mxu0 %v335
    %358 = vmatprep.subr.bf16.mxu0 0
    %359 = vmatpush1.bf16.msra.mxu0 %v336
    %360 = vmatprep.subr.bf16.mxu0 0
    %361 = vmatpush1.bf16.msra.mxu0 %v337
    %362 = vmatprep.subr.bf16.mxu0 0
    %363 = vmatpush1.bf16.msra.mxu0 0
    %364 = vmatprep.subr.bf16.mxu0 0
    %365 = vmatpush1.bf16.msra.mxu0 0
    %366 = vmatprep.subr.bf16.mxu0 0
    %367 = vmatpush1.bf16.msra.mxu0 0
    %368 = vmatprep.subr.bf16.mxu0 0
    %369 = vmatpush1.bf16.msra.mxu0 0
    %370 = vmatprep.subr.bf16.mxu0 0
    %371 = vmatpush1.bf16.msra.mxu0 0
    %372 = vmatprep.subr.bf16.mxu0 0
    %373 = vmatpush1.bf16.msra.mxu0 0
    %374 = vmatprep.subr.bf16.mxu0 0
    %375 = vmatpush1.bf16.msra.mxu0 0
    %376 = vmatprep.subr.bf16.mxu0 0
    %377 = vmatpush1.bf16.msra.mxu0 0
    %378 = vmatprep.mubr.bf16.mxu0 0
    %379 = vmatmul.mubr.bf16.gmra.mrb[0].mxu0 %v297
    %v380 = vpop.f32.mrb[0].mxu0
    %v381 = vadd.f32 0.0, %v380
    %v382 = vpop.f32.mrb[0].mxu0
    %v383 = vpop.f32.mrb[0].mxu0
    %v384 = vpop.f32.mrb[0].mxu0
    %385 = vdwg.mxu0
    %v386 = vadd.f32 %v296, %v381
    %387 = vst [vmem:[#allocation2] sm:$0xff] %v386
    %v388 = vtanh.pop %v386
    %s389 = scalar_lea.vmem [#allocation2], 8
    %v390 = vld [vmem:[%s389] sm:$0xff]
    %v391 = vpack.c.bf16 %v388, %v388
    %392 = vmatprep.subr.bf16.mxu0 0
    %393 = vmatpush1.bf16.msra.mxu0 %v330
    %394 = vmatprep.subr.bf16.mxu0 0
    %395 = vmatpush1.bf16.msra.mxu0 %v331
    %396 = vmatprep.subr.bf16.mxu0 0
    %397 = vmatpush1.bf16.msra.mxu0 %v332
    %398 = vmatprep.subr.bf16.mxu0 0
    %399 = vmatpush1.bf16.msra.mxu0 %v333
    %400 = vmatprep.subr.bf16.mxu0 0
    %401 = vmatpush1.bf16.msra.mxu0 %v334
    %402 = vmatprep.subr.bf16.mxu0 0
    %403 = vmatpush1.bf16.msra.mxu0 %v335
    %404 = vmatprep.subr.bf16.mxu0 0
    %405 = vmatpush1.bf16.msra.mxu0 %v336
    %406 = vmatprep.subr.bf16.mxu0 0
    %407 = vmatpush1.bf16.msra.mxu0 %v337
    %408 = vmatprep.subr.bf16.mxu0 0
    %409 = vmatpush1.bf16.msra.mxu0 0
    %410 = vmatprep.subr.bf16.mxu0 0
    %411 = vmatpush1.bf16.msra.mxu0 0
    %412 = vmatprep.subr.bf16.mxu0 0
    %413 = vmatpush1.bf16.msra.mxu0 0
    %414 = vmatprep.subr.bf16.mxu0 0
    %415 = vmatpush1.bf16.msra.mxu0 0
    %416 = vmatprep.subr.bf16.mxu0 0
    %417 = vmatpush1.bf16.msra.mxu0 0
    %418 = vmatprep.subr.bf16.mxu0 0
    %419 = vmatpush1.bf16.msra.mxu0 0
    %420 = vmatprep.subr.bf16.mxu0 0
    %421 = vmatpush1.bf16.msra.mxu0 0
    %422 = vmatprep.subr.bf16.mxu0 0
    %423 = vmatpush1.bf16.msra.mxu0 0
    %424 = vmatprep.mubr.bf16.mxu0 0
    %425 = vmatmul.mubr.bf16.gmra.mrb[0].mxu0 %v391
    %v426 = vpop.f32.mrb[0].mxu0
    %v427 = vadd.f32 0.0, %v426
    %v428 = vpop.f32.mrb[0].mxu0
    %v429 = vpop.f32.mrb[0].mxu0
    %v430 = vpop.f32.mrb[0].mxu0
    %431 = vdwg.mxu0
    %v432 = vadd.f32 %v390, %v427
    %433 = vst [vmem:[%s389] sm:$0xff] %v432
    %v434 = vtanh.pop %v432
    %s435 = scalar_lea.vmem [#allocation2], 16
    %v436 = vld [vmem:[%s435] sm:$0xff]
    %v437 = vpack.c.bf16 %v434, %v434
    %438 = vmatprep.subr.bf16.mxu0 0
    %439 = vmatpush1.bf16.msra.mxu0 %v330
    %440 = vmatprep.subr.bf16.mxu0 0
    %441 = vmatpush1.bf16.msra.mxu0 %v331
    %442 = vmatprep.subr.bf16.mxu0 0
    %443 = vmatpush1.bf16.msra.mxu0 %v332
    %444 = vmatprep.subr.bf16.mxu0 0
    %445 = vmatpush1.bf16.msra.mxu0 %v333
    %446 = vmatprep.subr.bf16.mxu0 0
    %447 = vmatpush1.bf16.msra.mxu0 %v334
    %448 = vmatprep.subr.bf16.mxu0 0
    %449 = vmatpush1.bf16.msra.mxu0 %v335
    %450 = vmatprep.subr.bf16.mxu0 0
    %451 = vmatpush1.bf16.msra.mxu0 %v336
    %452 = vmatprep.subr.bf16.mxu0 0
    %453 = vmatpush1.bf16.msra.mxu0 %v337
    %454 = vmatprep.subr.bf16.mxu0 0
    %455 = vmatpush1.bf16.msra.mxu0 0
    %456 = vmatprep.subr.bf16.mxu0 0
    %457 = vmatpush1.bf16.msra.mxu0 0
    %458 = vmatprep.subr.bf16.mxu0 0
    %459 = vmatpush1.bf16.msra.mxu0 0
    %460 = vmatprep.subr.bf16.mxu0 0
    %461 = vmatpush1.bf16.msra.mxu0 0
    %462 = vmatprep.subr.bf16.mxu0 0
    %463 = vmatpush1.bf16.msra.mxu0 0
    %464 = vmatprep.subr.bf16.mxu0 0
    %465 = vmatpush1.bf16.msra.mxu0 0
    %466 = vmatprep.subr.bf16.mxu0 0
    %467 = vmatpush1.bf16.msra.mxu0 0
    %468 = vmatprep.subr.bf16.mxu0 0
    %469 = vmatpush1.bf16.msra.mxu0 0
    %470 = vmatprep.mubr.bf16.mxu0 0
    %471 = vmatmul.mubr.bf16.gmra.mrb[0].mxu0 %v437
    %v472 = vpop.f32.mrb[0].mxu0
    %v473 = vadd.f32 0.0, %v472
    %v474 = vpop.f32.mrb[0].mxu0
    %v475 = vpop.f32.mrb[0].mxu0
    %v476 = vpop.f32.mrb[0].mxu0
    %477 = vdwg.mxu0
    %v478 = vadd.f32 %v436, %v473
    %479 = vst [vmem:[%s435] sm:$0xff] %v478
    %v480 = vtanh.pop %v478
    %s481 = scalar_lea.vmem [#allocation2], 24
    %v482 = vld [vmem:[%s481] sm:$0xff]
    %v483 = vpack.c.bf16 %v480, %v480
    %484 = vmatprep.subr.bf16.mxu0 0
    %485 = vmatpush1.bf16.msra.mxu0 %v330
    %486 = vmatprep.subr.bf16.mxu0 0
    %487 = vmatpush1.bf16.msra.mxu0 %v331
    %488 = vmatprep.subr.bf16.mxu0 0
    %489 = vmatpush1.bf16.msra.mxu0 %v332
    %490 = vmatprep.subr.bf16.mxu0 0
    %491 = vmatpush1.bf16.msra.mxu0 %v333
    %492 = vmatprep.subr.bf16.mxu0 0
    %493 = vmatpush1.bf16.msra.mxu0 %v334
    %494 = vmatprep.subr.bf16.mxu0 0
    %495 = vmatpush1.bf16.msra.mxu0 %v335
    %496 = vmatprep.subr.bf16.mxu0 0
    %497 = vmatpush1.bf16.msra.mxu0 %v336
    %498 = vmatprep.subr.bf16.mxu0 0
    %499 = vmatpush1.bf16.msra.mxu0 %v337
    %500 = vmatprep.subr.bf16.mxu0 0
    %501 = vmatpush1.bf16.msra.mxu0 0
    %502 = vmatprep.subr.bf16.mxu0 0
    %503 = vmatpush1.bf16.msra.mxu0 0
    %504 = vmatprep.subr.bf16.mxu0 0
    %505 = vmatpush1.bf16.msra.mxu0 0
    %506 = vmatprep.subr.bf16.mxu0 0
    %507 = vmatpush1.bf16.msra.mxu0 0
    %508 = vmatprep.subr.bf16.mxu0 0
    %509 = vmatpush1.bf16.msra.mxu0 0
    %510 = vmatprep.subr.bf16.mxu0 0
    %511 = vmatpush1.bf16.msra.mxu0 0
    %512 = vmatprep.subr.bf16.mxu0 0
    %513 = vmatpush1.bf16.msra.mxu0 0
    %514 = vmatprep.subr.bf16.mxu0 0
    %515 = vmatpush1.bf16.msra.mxu0 0
    %516 = vmatprep.mubr.bf16.mxu0 0
    %517 = vmatmul.mubr.bf16.gmra.mrb[0].mxu0 %v483
    %v518 = vpop.f32.mrb[0].mxu0
    %v519 = vadd.f32 0.0, %v518
    %v520 = vpop.f32.mrb[0].mxu0
    %v521 = vpop.f32.mrb[0].mxu0
    %v522 = vpop.f32.mrb[0].mxu0
    %523 = vdwg.mxu0
    %v524 = vadd.f32 %v482, %v519
    %525 = vst [vmem:[%s481] sm:$0xff] %v524
    %v526 = vtanh.pop %v524
    %s527 = scalar_lea.vmem [#allocation2], 32
    %v528 = vld [vmem:[%s527] sm:$0xff]
    %v529 = vpack.c.bf16 %v526, %v526
    %530 = vmatprep.subr.bf16.mxu0 0
    %531 = vmatpush1.bf16.msra.mxu0 %v330
    %532 = vmatprep.subr.bf16.mxu0 0
    %533 = vmatpush1.bf16.msra.mxu0 %v331
    %534 = vmatprep.subr.bf16.mxu0 0
    %535 = vmatpush1.bf16.msra.mxu0 %v332
    %536 = vmatprep.subr.bf16.mxu0 0
    %537 = vmatpush1.bf16.msra.mxu0 %v333
    %538 = vmatprep.subr.bf16.mxu0 0
    %539 = vmatpush1.bf16.msra.mxu0 %v334
    %540 = vmatprep.subr.bf16.mxu0 0
    %541 = vmatpush1.bf16.msra.mxu0 %v335
    %542 = vmatprep.subr.bf16.mxu0 0
    %543 = vmatpush1.bf16.msra.mxu0 %v336
    %544 = vmatprep.subr.bf16.mxu0 0
    %545 = vmatpush1.bf16.msra.mxu0 %v337
    %546 = vmatprep.subr.bf16.mxu0 0
    %547 = vmatpush1.bf16.msra.mxu0 0
    %548 = vmatprep.subr.bf16.mxu0 0
    %549 = vmatpush1.bf16.msra.mxu0 0
    %550 = vmatprep.subr.bf16.mxu0 0
    %551 = vmatpush1.bf16.msra.mxu0 0
    %552 = vmatprep.subr.bf16.mxu0 0
    %553 = vmatpush1.bf16.msra.mxu0 0
    %554 = vmatprep.subr.bf16.mxu0 0
    %555 = vmatpush1.bf16.msra.mxu0 0
    %556 = vmatprep.subr.bf16.mxu0 0
    %557 = vmatpush1.bf16.msra.mxu0 0
    %558 = vmatprep.subr.bf16.mxu0 0
    %559 = vmatpush1.bf16.msra.mxu0 0
    %560 = vmatprep.subr.bf16.mxu0 0
    %561 = vmatpush1.bf16.msra.mxu0 0
    %562 = vmatprep.mubr.bf16.mxu0 0
    %563 = vmatmul.mubr.bf16.gmra.mrb[0].mxu0 %v529
    %v564 = vpop.f32.mrb[0].mxu0
    %v565 = vadd.f32 0.0, %v564
    %v566 = vpop.f32.mrb[0].mxu0
    %v567 = vpop.f32.mrb[0].mxu0
    %v568 = vpop.f32.mrb[0].mxu0
    %569 = vdwg.mxu0
    %v570 = vadd.f32 %v528, %v565
    %571 = vst [vmem:[%s527] sm:$0xff] %v570
    %v572 = vtanh.pop %v570
    %s573 = scalar_lea.vmem [#allocation2], 40
    %v574 = vld [vmem:[%s573] sm:$0xff]
    %v575 = vpack.c.bf16 %v572, %v572
    %576 = vmatprep.subr.bf16.mxu0 0
    %577 = vmatpush1.bf16.msra.mxu0 %v330
    %578 = vmatprep.subr.bf16.mxu0 0
    %579 = vmatpush1.bf16.msra.mxu0 %v331
    %580 = vmatprep.subr.bf16.mxu0 0
    %581 = vmatpush1.bf16.msra.mxu0 %v332
    %582 = vmatprep.subr.bf16.mxu0 0
    %583 = vmatpush1.bf16.msra.mxu0 %v333
    %584 = vmatprep.subr.bf16.mxu0 0
    %585 = vmatpush1.bf16.msra.mxu0 %v334
    %586 = vmatprep.subr.bf16.mxu0 0
    %587 = vmatpush1.bf16.msra.mxu0 %v335
    %588 = vmatprep.subr.bf16.mxu0 0
    %589 = vmatpush1.bf16.msra.mxu0 %v336
    %590 = vmatprep.subr.bf16.mxu0 0
    %591 = vmatpush1.bf16.msra.mxu0 %v337
    %592 = vmatprep.subr.bf16.mxu0 0
    %593 = vmatpush1.bf16.msra.mxu0 0
    %594 = vmatprep.subr.bf16.mxu0 0
    %595 = vmatpush1.bf16.msra.mxu0 0
    %596 = vmatprep.subr.bf16.mxu0 0
    %597 = vmatpush1.bf16.msra.mxu0 0
    %598 = vmatprep.subr.bf16.mxu0 0
    %599 = vmatpush1.bf16.msra.mxu0 0
    %600 = vmatprep.subr.bf16.mxu0 0
    %601 = vmatpush1.bf16.msra.mxu0 0
    %602 = vmatprep.subr.bf16.mxu0 0
    %603 = vmatpush1.bf16.msra.mxu0 0
    %604 = vmatprep.subr.bf16.mxu0 0
    %605 = vmatpush1.bf16.msra.mxu0 0
    %606 = vmatprep.subr.bf16.mxu0 0
    %607 = vmatpush1.bf16.msra.mxu0 0
    %608 = vmatprep.mubr.bf16.mxu0 0
    %609 = vmatmul.mubr.bf16.gmra.mrb[0].mxu0 %v575
    %v610 = vpop.f32.mrb[0].mxu0
    %v611 = vadd.f32 0.0, %v610
    %v612 = vpop.f32.mrb[0].mxu0
    %v613 = vpop.f32.mrb[0].mxu0
    %v614 = vpop.f32.mrb[0].mxu0
    %615 = vdwg.mxu0
    %v616 = vadd.f32 %v574, %v611
    %617 = vst [vmem:[%s573] sm:$0xff] %v616
    %v618 = vtanh.pop %v616
    %s619 = scalar_lea.vmem [#allocation2], 48
    %v620 = vld [vmem:[%s619] sm:$0xff]
    %v621 = vpack.c.bf16 %v618, %v618
    %622 = vmatprep.subr.bf16.mxu0 0
    %623 = vmatpush1.bf16.msra.mxu0 %v330
    %624 = vmatprep.subr.bf16.mxu0 0
    %625 = vmatpush1.bf16.msra.mxu0 %v331
    %626 = vmatprep.subr.bf16.mxu0 0
    %627 = vmatpush1.bf16.msra.mxu0 %v332
    %628 = vmatprep.subr.bf16.mxu0 0
    %629 = vmatpush1.bf16.msra.mxu0 %v333
    %630 = vmatprep.subr.bf16.mxu0 0
    %631 = vmatpush1.bf16.msra.mxu0 %v334
    %632 = vmatprep.subr.bf16.mxu0 0
    %633 = vmatpush1.bf16.msra.mxu0 %v335
    %634 = vmatprep.subr.bf16.mxu0 0
    %635 = vmatpush1.bf16.msra.mxu0 %v336
    %636 = vmatprep.subr.bf16.mxu0 0
    %637 = vmatpush1.bf16.msra.mxu0 %v337
    %638 = vmatprep.subr.bf16.mxu0 0
    %639 = vmatpush1.bf16.msra.mxu0 0
    %640 = vmatprep.subr.bf16.mxu0 0
    %641 = vmatpush1.bf16.msra.mxu0 0
    %642 = vmatprep.subr.bf16.mxu0 0
    %643 = vmatpush1.bf16.msra.mxu0 0
    %644 = vmatprep.subr.bf16.mxu0 0
    %645 = vmatpush1.bf16.msra.mxu0 0
    %646 = vmatprep.subr.bf16.mxu0 0
    %647 = vmatpush1.bf16.msra.mxu0 0
    %648 = vmatprep.subr.bf16.mxu0 0
    %649 = vmatpush1.bf16.msra.mxu0 0
    %650 = vmatprep.subr.bf16.mxu0 0
    %651 = vmatpush1.bf16.msra.mxu0 0
    %652 = vmatprep.subr.bf16.mxu0 0
    %653 = vmatpush1.bf16.msra.mxu0 0
    %654 = vmatprep.mubr.bf16.mxu0 0
    %655 = vmatmul.mubr.bf16.gmra.mrb[0].mxu0 %v621
    %v656 = vpop.f32.mrb[0].mxu0
    %v657 = vadd.f32 0.0, %v656
    %v658 = vpop.f32.mrb[0].mxu0
    %v659 = vpop.f32.mrb[0].mxu0
    %v660 = vpop.f32.mrb[0].mxu0
    %661 = vdwg.mxu0
    %v662 = vadd.f32 %v620, %v657
    %663 = vst [vmem:[%s619] sm:$0xff] %v662
    %v664 = vtanh.pop %v662
    %s665 = scalar_lea.vmem [#allocation2], 56
    %v666 = vld [vmem:[%s665] sm:$0xff]
    %v667 = vpack.c.bf16 %v664, %v664
    %668 = vmatprep.subr.bf16.mxu0 0
    %669 = vmatpush1.bf16.msra.mxu0 %v330
    %670 = vmatprep.subr.bf16.mxu0 0
    %671 = vmatpush1.bf16.msra.mxu0 %v331
    %672 = vmatprep.subr.bf16.mxu0 0
    %673 = vmatpush1.bf16.msra.mxu0 %v332
    %674 = vmatprep.subr.bf16.mxu0 0
    %675 = vmatpush1.bf16.msra.mxu0 %v333
    %676 = vmatprep.subr.bf16.mxu0 0
    %677 = vmatpush1.bf16.msra.mxu0 %v334
    %678 = vmatprep.subr.bf16.mxu0 0
    %679 = vmatpush1.bf16.msra.mxu0 %v335
    %680 = vmatprep.subr.bf16.mxu0 0
    %681 = vmatpush1.bf16.msra.mxu0 %v336
    %682 = vmatprep.subr.bf16.mxu0 0
    %683 = vmatpush1.bf16.msra.mxu0 %v337
    %684 = vmatprep.subr.bf16.mxu0 0
    %685 = vmatpush1.bf16.msra.mxu0 0
    %686 = vmatprep.subr.bf16.mxu0 0
    %687 = vmatpush1.bf16.msra.mxu0 0
    %688 = vmatprep.subr.bf16.mxu0 0
    %689 = vmatpush1.bf16.msra.mxu0 0
    %690 = vmatprep.subr.bf16.mxu0 0
    %691 = vmatpush1.bf16.msra.mxu0 0
    %692 = vmatprep.subr.bf16.mxu0 0
    %693 = vmatpush1.bf16.msra.mxu0 0
    %694 = vmatprep.subr.bf16.mxu0 0
    %695 = vmatpush1.bf16.msra.mxu0 0
    %696 = vmatprep.subr.bf16.mxu0 0
    %697 = vmatpush1.bf16.msra.mxu0 0
    %698 = vmatprep.subr.bf16.mxu0 0
    %699 = vmatpush1.bf16.msra.mxu0 0
    %700 = vmatprep.mubr.bf16.mxu0 0
    %701 = vmatmul.mubr.bf16.gmra.mrb[0].mxu0 %v667
    %v702 = vpop.f32.mrb[0].mxu0
    %v703 = vadd.f32 0.0, %v702
    %v704 = vpop.f32.mrb[0].mxu0
    %v705 = vpop.f32.mrb[0].mxu0
    %v706 = vpop.f32.mrb[0].mxu0
    %707 = vdwg.mxu0
    %v708 = vadd.f32 %v666, %v703
    %709 = vst [vmem:[%s665] sm:$0xff] %v708
    %v710 = vtanh.pop %v708
    %711 = vst [vmem:[#allocation13] sm:$0xff] %v710
    %v712 = vld [vmem:[#allocation2] sm:$0xff]
    %v713 = vld [vmem:[#allocation2 + $0x8] sm:$0xff]
    %v714 = vld [vmem:[#allocation2 + $0x10] sm:$0xff]
    %v715 = vld [vmem:[#allocation2 + $0x18] sm:$0xff]
    %v716 = vld [vmem:[#allocation2 + $0x20] sm:$0xff]
    %v717 = vld [vmem:[#allocation2 + $0x28] sm:$0xff]
    %v718 = vld [vmem:[#allocation2 + $0x30] sm:$0xff]
    %v719 = vld [vmem:[#allocation2 + $0x38] sm:$0xff]
    %v720 = vpack.c.bf16 %v712, %v712
    %v721 = vpack.c.bf16 %v713, %v713
    %v722 = vpack.c.bf16 %v714, %v714
    %v723 = vpack.c.bf16 %v715, %v715
    %v724 = vpack.c.bf16 %v716, %v716
    %v725 = vpack.c.bf16 %v717, %v717
    %v726 = vpack.c.bf16 %v718, %v718
    %v727 = vpack.c.bf16 %v719, %v719
    %v728 = vld [vmem:[#allocation11] sm:$0xf]
    %v729 = vld [vmem:[#allocation11 + $0x4] sm:$0xf]
    %v730 = vld [vmem:[#allocation11 + $0x8] sm:$0xf]
    %v731 = vld [vmem:[#allocation11 + $0xc] sm:$0xf]
    %v732 = vld [vmem:[#allocation11 + $0x10] sm:$0xf]
    %v733 = vld [vmem:[#allocation11 + $0x14] sm:$0xf]
    %v734 = vld [vmem:[#allocation11 + $0x18] sm:$0xf]
    %v735 = vld [vmem:[#allocation11 + $0x1c] sm:$0xf]
    %v736 = vld [vmem:[#allocation11 + $0x20] sm:$0xf]
    %v737 = vld [vmem:[#allocation11 + $0x24] sm:$0xf]
    %v738 = vld [vmem:[#allocation11 + $0x28] sm:$0xf]
    %v739 = vld [vmem:[#allocation11 + $0x2c] sm:$0xf]
    %v740 = vld [vmem:[#allocation11 + $0x30] sm:$0xf]
    %v741 = vld [vmem:[#allocation11 + $0x34] sm:$0xf]
    %v742 = vld [vmem:[#allocation11 + $0x38] sm:$0xf]
    %v743 = vld [vmem:[#allocation11 + $0x3c] sm:$0xf]
    %v744 = vld [vmem:[%s6] sm:$0x1]
    %v746 = vlaneseq
    %v747 = vshrl.u32 %v746, 7
    %v748 = vsub.s32 0, %v747
    %v749 = vrot.slane %v744, %v748
    %v759 = vunpack.c.l.b16 %v720
    %v760 = vunpack.c.l.b16 %v721
    %v761 = vunpack.c.l.b16 %v722
    %v762 = vunpack.c.l.b16 %v723
    %v763 = vunpack.c.l.b16 %v724
    %v764 = vunpack.c.l.b16 %v725
    %v765 = vunpack.c.l.b16 %v726
    %v766 = vunpack.c.l.b16 %v727
    %v767 = vpack.c.b16 %v760, %v759
    %v768 = vpack.c.b16 %v762, %v761
    %v769 = vpack.c.b16 %v764, %v763
    %v770 = vpack.c.b16 %v766, %v765
    %v791 = vunpack.c.l.b16 %v728
    %v792 = vunpack.c.l.b16 %v729
    %v793 = vunpack.c.l.b16 %v730
    %v794 = vunpack.c.l.b16 %v731
    %v795 = vunpack.c.l.b16 %v732
    %v796 = vunpack.c.l.b16 %v733
    %v797 = vunpack.c.l.b16 %v734
    %v798 = vunpack.c.l.b16 %v735
    %v799 = vunpack.c.l.b16 %v736
    %v800 = vunpack.c.l.b16 %v737
    %v801 = vunpack.c.l.b16 %v738
    %v802 = vunpack.c.l.b16 %v739
    %v803 = vunpack.c.l.b16 %v740
    %v804 = vunpack.c.l.b16 %v741
    %v805 = vunpack.c.l.b16 %v742
    %v806 = vunpack.c.l.b16 %v743
    %v807 = vpack.c.b16 %v792, %v791
    %v808 = vpack.c.b16 %v794, %v793
    %v809 = vpack.c.b16 %v796, %v795
    %v810 = vpack.c.b16 %v798, %v797
    %v811 = vpack.c.b16 %v800, %v799
    %v812 = vpack.c.b16 %v802, %v801
    %v813 = vpack.c.b16 %v804, %v803
    %v814 = vpack.c.b16 %v806, %v805
    %823 = vmatprep.subr.bf16.mxu0 0
    %824 = vmatpush1.bf16.msra.mxu0 %v807
    %825 = vmatprep.subr.bf16.mxu0 0
    %826 = vmatpush1.bf16.msra.mxu0 %v808
    %827 = vmatprep.subr.bf16.mxu0 0
    %828 = vmatpush1.bf16.msra.mxu0 %v809
    %829 = vmatprep.subr.bf16.mxu0 0
    %830 = vmatpush1.bf16.msra.mxu0 %v810
    %831 = vmatprep.subr.bf16.mxu0 0
    %832 = vmatpush1.bf16.msra.mxu0 %v811
    %833 = vmatprep.subr.bf16.mxu0 0
    %834 = vmatpush1.bf16.msra.mxu0 %v812
    %835 = vmatprep.subr.bf16.mxu0 0
    %836 = vmatpush1.bf16.msra.mxu0 %v813
    %837 = vmatprep.subr.bf16.mxu0 0
    %838 = vmatpush1.bf16.msra.mxu0 %v814
    %839 = vmatprep.subr.bf16.mxu0 0
    %840 = vmatpush1.bf16.msra.mxu0 0
    %841 = vmatprep.subr.bf16.mxu0 0
    %842 = vmatpush1.bf16.msra.mxu0 0
    %843 = vmatprep.subr.bf16.mxu0 0
    %844 = vmatpush1.bf16.msra.mxu0 0
    %845 = vmatprep.subr.bf16.mxu0 0
    %846 = vmatpush1.bf16.msra.mxu0 0
    %847 = vmatprep.subr.bf16.mxu0 0
    %848 = vmatpush1.bf16.msra.mxu0 0
    %849 = vmatprep.subr.bf16.mxu0 0
    %850 = vmatpush1.bf16.msra.mxu0 0
    %851 = vmatprep.subr.bf16.mxu0 0
    %852 = vmatpush1.bf16.msra.mxu0 0
    %853 = vmatprep.subr.bf16.mxu0 0
    %854 = vmatpush1.bf16.msra.mxu0 0
    %855 = vmatprep.mubr.bf16.mxu0 0
    %856 = vmatmul.mubr.bf16.gmra.mrb[0].mxu0 %v767
    %v857 = vpop.f32.mrb[0].mxu0
    %v858 = vadd.f32 %v749, %v857
    %v859 = vpop.f32.mrb[0].mxu0
    %v860 = vpop.f32.mrb[0].mxu0
    %v861 = vadd.f32 %v749, %v860
    %v862 = vpop.f32.mrb[0].mxu0
    %863 = vmatprep.mubr.bf16.mxu0 0
    %864 = vmatmul.mubr.bf16.gmra.mrb[0].mxu0 %v768
    %v865 = vpop.f32.mrb[0].mxu0
    %v866 = vadd.f32 %v749, %v865
    %v867 = vpop.f32.mrb[0].mxu0
    %v868 = vpop.f32.mrb[0].mxu0
    %v869 = vadd.f32 %v749, %v868
    %v870 = vpop.f32.mrb[0].mxu0
    %871 = vmatprep.mubr.bf16.mxu0 0
    %872 = vmatmul.mubr.bf16.gmra.mrb[0].mxu0 %v769
    %v873 = vpop.f32.mrb[0].mxu0
    %v874 = vadd.f32 %v749, %v873
    %v875 = vpop.f32.mrb[0].mxu0
    %v876 = vpop.f32.mrb[0].mxu0
    %v877 = vadd.f32 %v749, %v876
    %v878 = vpop.f32.mrb[0].mxu0
    %879 = vmatprep.mubr.bf16.mxu0 0
    %880 = vmatmul.mubr.bf16.gmra.mrb[0].mxu0 %v770
    %v881 = vpop.f32.mrb[0].mxu0
    %v882 = vadd.f32 %v749, %v881
    %v883 = vpop.f32.mrb[0].mxu0
    %v884 = vpop.f32.mrb[0].mxu0
    %v885 = vadd.f32 %v749, %v884
    %v886 = vpop.f32.mrb[0].mxu0
    %887 = vdwg.mxu0
    %v888 = vtanh.pop %v858
    %v889 = vtanh.pop %v861
    %v890 = vtanh.pop %v866
    %v891 = vtanh.pop %v869
    %v892 = vtanh.pop %v874
    %v893 = vtanh.pop %v877
    %v894 = vtanh.pop %v882
    %v895 = vtanh.pop %v885
    %v896 = vpack.c.bf16 %v888, %v888
    %v897 = vpack.c.bf16 %v889, %v889
    %v898 = vpack.c.bf16 %v890, %v890
    %v899 = vpack.c.bf16 %v891, %v891
    %v900 = vpack.c.bf16 %v892, %v892
    %v901 = vpack.c.bf16 %v893, %v893
    %v902 = vpack.c.bf16 %v894, %v894
    %v903 = vpack.c.bf16 %v895, %v895
    %904 = vst [vmem:[#allocation12] sm:$0xf] %v896
    %905 = vst [vmem:[#allocation12 + $0x4] sm:$0xf] %v897
    %906 = vst [vmem:[#allocation12 + $0x8] sm:$0xf] %v898
    %907 = vst [vmem:[#allocation12 + $0xc] sm:$0xf] %v899
    %908 = vst [vmem:[#allocation12 + $0x10] sm:$0xf] %v900
    %909 = vst [vmem:[#allocation12 + $0x14] sm:$0xf] %v901
    %910 = vst [vmem:[#allocation12 + $0x18] sm:$0xf] %v902
    %911 = vst [vmem:[#allocation12 + $0x1c] sm:$0xf] %v903
    // Predicated region
    $region54: #{tpu_custom_call.1} parent=1 // pred_check
      _
    $region55: #{tpu_custom_call.1} parent=1 // pred_check_branch
      %913 = sbr.rel (0) target = $region57
    $region56: #{tpu_custom_call.1} parent=1 // pred_region
      %s915 = ssub.s32 512, 512
      %916 = vsyncadd [#allocation5], %s915
      %s917 = sshll.u32 [#allocation12], 4
      %s918 = int_to_ptr.vmem [resolvable:$true] %s917
      %923 = dma.vmem_to_hbm [thread:$0]  %s918, 512, %s7, [#allocation5], 64, 64, 4
    $region57: #{tpu_custom_call.1} parent=1 // pred_fallthru
      _
    // Predicated region
    $region58: #{tpu_custom_call.1} parent=1 // pred_check
      _
    $region59: #{tpu_custom_call.1} parent=1 // pred_check_branch
      %925 = sbr.rel (0) target = $region61
    $region60: #{tpu_custom_call.1} parent=1 // pred_region
      %s927 = ssub.s32 128, 128
      %928 = vsyncadd [#allocation14], %s927
      %s930 = sshll.u32 [#allocation13], 4
      %s931 = int_to_ptr.vmem [resolvable:$true] %s930
      %933 = dma.vmem_to_hbm [thread:$0]  %s931, 128, %s8, [#allocation14]
    $region61: #{tpu_custom_call.1} parent=1 // pred_fallthru
      _
    // Predicated region
    $region62: #{tpu_custom_call.1} parent=1 // pred_check
      _
    $region63: #{tpu_custom_call.1} parent=1 // pred_check_branch
      %935 = sbr.rel (0) target = $region65
    $region64: #{tpu_custom_call.1} parent=1 // pred_region
      %936 = dma.done [#allocation5], 512
    $region65: #{tpu_custom_call.1} parent=1 // pred_fallthru
      _
    // Predicated region
    $region66: #{tpu_custom_call.1} parent=1 // pred_check
      _
    $region67: #{tpu_custom_call.1} parent=1 // pred_check_branch
      %938 = sbr.rel (0) target = $region69
    $region68: #{tpu_custom_call.1} parent=1 // pred_region
      %939 = dma.done [#allocation14], 128
    $region69: #{tpu_custom_call.1} parent=1 // pred_fallthru
      _
    %940 = vsyncpa [#allocation4], 1
    %941 = vsyncpa [#allocation7], 1
    %942 = vsyncpa [#allocation10], 1
    %943 = vsyncpa [#allocation5], 1
    %944 = vsyncpa [#allocation14], 1

</llo_original>
